<compile_context>
chip_gen: v7x
topology: tpu7x:2x2x1
jax: 0.10.0
libtpu: 0.0.40
codegen_flags: <defaults>
</compile_context>

<pallas_src>
import math

import jax
import jax.numpy as jnp
from jax.experimental import pallas as pl
from jax.experimental.pallas import tpu as pltpu


def _round_up(x, m):
    return (x + m - 1) // m * m


# --------------------------------------------------------------------------
# Optional single-buffering of grid-invariant weights (probe once, fall back)
# --------------------------------------------------------------------------
_BUFFERED_SINGLE = None


def _single_buffer_supported():
    """Probe whether pipeline_mode=pl.Buffered(1) works on this jax build."""
    global _BUFFERED_SINGLE
    if _BUFFERED_SINGLE is not None:
        return _BUFFERED_SINGLE
    ok = False
    if hasattr(pl, "Buffered"):
        try:
            w = jnp.ones((8, 128), jnp.float32)
            y = jnp.arange(16 * 128, dtype=jnp.float32).reshape(16, 128)

            def _probe(w_ref, y_ref, o_ref):
                o_ref[...] = w_ref[...] + y_ref[...]

            out = pl.pallas_call(
                _probe,
                out_shape=jax.ShapeDtypeStruct((16, 128), jnp.float32),
                grid=(2,),
                in_specs=[pl.BlockSpec((8, 128), lambda i: (0, 0),
                                       pipeline_mode=pl.Buffered(1)),
                          pl.BlockSpec((8, 128), lambda i: (i, 0))],
                out_specs=pl.BlockSpec((8, 128), lambda i: (i, 0)),
            )(w, y)
            ok = bool(jnp.allclose(out, y + 1.0))
        except Exception:
            ok = False
    _BUFFERED_SINGLE = ok
    return ok


def _wspec(shape, index_map):
    """BlockSpec for a grid-invariant weight: single-buffered when supported."""
    if _single_buffer_supported():
        return pl.BlockSpec(shape, index_map, pipeline_mode=pl.Buffered(1))
    return pl.BlockSpec(shape, index_map)


# --------------------------------------------------------------------------
# Kernel 1: fused state encoder (1x1 conv + ReLU + Flatten + Linear + ReLU)
# --------------------------------------------------------------------------
def encoder_kernel(x_ref, wbd_ref, w1_ref, b1_ref, o_ref):
    # x:  (TN, C*HW) native NCHW-flattened rows
    # wbd:(C*HW, 32*HW) strided-diagonal matmul == the 1x1 conv (bias=False)
    # w1: (32*HW, Hdp) fc1 weight (NCHW flatten order matches directly)
    conv = jnp.maximum(
        jnp.dot(x_ref[...], wbd_ref[...], preferred_element_type=jnp.float32), 0.0)
    o_ref[...] = jnp.maximum(
        jnp.dot(conv, w1_ref[...], preferred_element_type=jnp.float32)
        + b1_ref[...], 0.0)


# --------------------------------------------------------------------------
# Kernel 2: GRU over time + actor/critic heads + Normal log_prob (fused)
# --------------------------------------------------------------------------
def gru_heads_kernel(enc_ref, act_ref, wih_ref, whh_ref, bih_ref, bhh_ref,
                     whd_ref, bhd_ref, scal_ref,
                     logp_ref, val_ref,
                     h_scr, gi_scr, hblk_scr):
    tt, tb, hdp = hblk_scr.shape

    @pl.when(pl.program_id(1) == 0)
    def _():
        h_scr[...] = jnp.zeros_like(h_scr)      # torch.zeros(1, B, hidden) init

    # --- hoisted input-gate matmul: whole time block at once (M = tt*tb) ---
    x_all = enc_ref[...].reshape(tt * tb, hdp)
    gi_scr[...] = (
        jnp.dot(x_all, wih_ref[...], preferred_element_type=jnp.float32)
        + bih_ref[...]).reshape(tt, tb, 3 * hdp)

    whh = whh_ref[...]                          # (Hdp, 3*Hdp), gate order r|z|n
    bhh = bhh_ref[...]                          # (1, 3*Hdp)

    def step(i, h):
        gi = gi_scr[i]                          # (tb, 3*Hdp) precomputed
        gh = jnp.dot(h, whh, preferred_element_type=jnp.float32) + bhh
        r = jax.nn.sigmoid(gi[:, :hdp] + gh[:, :hdp])
        z = jax.nn.sigmoid(gi[:, hdp:2 * hdp] + gh[:, hdp:2 * hdp])
        n = jnp.tanh(gi[:, 2 * hdp:] + r * gh[:, 2 * hdp:])
        h_new = (1.0 - z) * n + z * h
        hblk_scr[i] = h_new                     # lane-dense (Hdp=128) store
        return h_new

    h_scr[...] = jax.lax.fori_loop(0, tt, step, h_scr[...], unroll=True)

    # --- epilogue: fused actor+critic heads + log_prob on the whole block ---
    h2 = hblk_scr[...].reshape(tt * tb, hdp)
    heads = (jnp.dot(h2, whd_ref[...], preferred_element_type=jnp.float32)
             + bhd_ref[...])                                    # (tt*tb, 2)
    mean = jax.nn.sigmoid(heads[:, 0:1]).reshape(tt, tb, 1)
    val = heads[:, 1:2].reshape(tt, tb, 1)
    inv_sigma = scal_ref[0]                     # exp(-log_std)
    logc = scal_ref[1]                          # -log_std - 0.5*log(2*pi)
    diff = (act_ref[...] - mean) * inv_sigma
    logp_ref[...] = -0.5 * diff * diff + logc
    val_ref[...] = val


# --------------------------------------------------------------------------
# Wrapper (layout plumbing / weight permutation in plain JAX)
# --------------------------------------------------------------------------
def actor_critic_evaluate(state, action, p):
    """state: (L, B, C, H, W) f32 (NCHW per sample), action: (L, B) f32."""
    L, B, C, H, W = state.shape
    HW = H * W
    Hd = p['hidden']
    Hdp = _round_up(Hd, 128)                    # lane-aligned hidden dim
    f32 = jnp.float32

    # Pad batch to a multiple of 8 (MXU sublanes) and time to the time block.
    Bp = _round_up(max(B, 1), 8)
    tt = L if L <= 16 else 16
    Lp = _round_up(L, tt)
    if (Lp, Bp) != (L, B):
        state = jnp.pad(state, ((0, Lp - L), (0, Bp - B), (0, 0), (0, 0), (0, 0)))
        action = jnp.pad(action, ((0, Lp - L), (0, Bp - B)))
    N = Lp * Bp

    # ---- fused encoder ------------------------------------------------------
    # Native NCHW flatten (no wrapper transpose of the big activation tensor).
    x2 = state.reshape(N, C * HW).astype(f32)
    wc = p['conv_w'][:, :, 0, 0].astype(f32)                    # (32, C)
    # 1x1 conv as a strided-diagonal matmul in NCHW-flatten layout:
    #   W_bd[c*HW + hw, o*HW + hw] = wc[o, c]
    # TODO(synk): for large HW replace this HW^2-sized weight with a per-pixel
    # (C,32) matmul stage inside the kernel (VMEM hazard on v7x at HW>=256).
    w_bd = jnp.kron(wc.T, jnp.eye(HW, dtype=f32))               # (C*HW, 32*HW)
    # fc1 consumes the NCHW flatten of the conv output directly (no permute);
    # pad the output dim to Hdp (padded columns stay exactly zero thru ReLU).
    w1 = jnp.zeros((32 * HW, Hdp), f32).at[:, :Hd].set(p['fc1_w'].T.astype(f32))
    b1 = jnp.zeros((1, Hdp), f32).at[0, :Hd].set(p['fc1_b'].astype(f32))

    # Row tile: keep >=2 grid steps so both v7x TensorCores get work.
    if N >= 16:
        TN = min(512, _round_up(N // 2, 8))
    else:
        TN = _round_up(N, 8)
    Ne = _round_up(N, TN)
    x2e = jnp.pad(x2, ((0, Ne - N), (0, 0))) if Ne != N else x2

    # TODO(synk): set vmem_limit_bytes from the real tile/weight budget once
    # HW/Hd/TN grow (defaults are fine at these sizes); bf16 matmul operands
    # are a further 2x MXU win but change numerics — left in f32 here.
    enc = pl.pallas_call(
        encoder_kernel,
        out_shape=jax.ShapeDtypeStruct((Ne, Hdp), f32),
        grid=(Ne // TN,),
        in_specs=[pl.BlockSpec((TN, C * HW), lambda i: (i, 0)),
                  _wspec((C * HW, 32 * HW), lambda i: (0, 0)),
                  _wspec((32 * HW, Hdp), lambda i: (0, 0)),
                  _wspec((1, Hdp), lambda i: (0, 0))],
        out_specs=pl.BlockSpec((TN, Hdp), lambda i: (i, 0)),
        compiler_params=pltpu.CompilerParams(
            dimension_semantics=("parallel",)),
    )(x2e, w_bd, w1, b1)[:N]

    enc3 = enc.reshape(Lp, Bp, Hdp)

    # ---- GRU weights, gate-padded to Hdp and laid out [r | z | n] ----------
    def _pad_gate_w(w):        # torch (3*Hd, Hd) -> (Hdp, 3*Hdp), lane-aligned
        w3 = w.astype(f32).reshape(3, Hd, Hd)                   # (gate, out, in)
        wt = jnp.transpose(w3, (2, 0, 1))                       # (in, gate, out)
        return (jnp.zeros((Hdp, 3, Hdp), f32).at[:Hd, :, :Hd].set(wt)
                .reshape(Hdp, 3 * Hdp))

    def _pad_gate_b(b):        # torch (3*Hd,) -> (1, 3*Hdp)
        return (jnp.zeros((3, Hdp), f32).at[:, :Hd].set(b.astype(f32).reshape(3, Hd))
                .reshape(1, 3 * Hdp))

    wih = _pad_gate_w(p['w_ih'])
    whh = _pad_gate_w(p['w_hh'])
    bih = _pad_gate_b(p['b_ih'])
    bhh = _pad_gate_b(p['b_hh'])

    # Fused actor+critic head: one (Hdp, 2) matmul (col0=actor, col1=critic).
    w_heads = jnp.zeros((Hdp, 2), f32)
    w_heads = w_heads.at[:Hd, 0].set(p['actor_w'][0].astype(f32))
    w_heads = w_heads.at[:Hd, 1].set(p['critic_w'][0].astype(f32))
    b_heads = jnp.stack([p['actor_b'][0], p['critic_b'][0]]).reshape(1, 2).astype(f32)

    # Hoisted Normal-log_prob scalars, passed via SMEM.
    log_std = p['log_std'].astype(f32)[0]
    scal = jnp.stack([jnp.exp(-log_std),
                      -log_std - 0.5 * math.log(2.0 * math.pi)])

    act3 = action.astype(f32).reshape(Lp, Bp, 1)

    # Batch-tile the independent batch rows across cores when large enough.
    TB = 8 if Bp >= 16 else Bp

    logp3, val3 = pl.pallas_call(
        gru_heads_kernel,
        out_shape=(jax.ShapeDtypeStruct((Lp, Bp, 1), f32),
                   jax.ShapeDtypeStruct((Lp, Bp, 1), f32)),
        grid=(Bp // TB, Lp // tt),
        in_specs=[pl.BlockSpec((tt, TB, Hdp), lambda b, t: (t, b, 0)),
                  pl.BlockSpec((tt, TB, 1), lambda b, t: (t, b, 0)),
                  _wspec((Hdp, 3 * Hdp), lambda b, t: (0, 0)),
                  _wspec((Hdp, 3 * Hdp), lambda b, t: (0, 0)),
                  _wspec((1, 3 * Hdp), lambda b, t: (0, 0)),
                  _wspec((1, 3 * Hdp), lambda b, t: (0, 0)),
                  _wspec((Hdp, 2), lambda b, t: (0, 0)),
                  _wspec((1, 2), lambda b, t: (0, 0)),
                  pl.BlockSpec(memory_space=pltpu.MemorySpace.SMEM)],
        out_specs=(pl.BlockSpec((tt, TB, 1), lambda b, t: (t, b, 0)),
                   pl.BlockSpec((tt, TB, 1), lambda b, t: (t, b, 0))),
        scratch_shapes=[pltpu.VMEM((TB, Hdp), f32),          # carried hidden h
                        pltpu.VMEM((tt, TB, 3 * Hdp), f32),  # hoisted gi block
                        pltpu.VMEM((tt, TB, Hdp), f32)],     # block hidden states
        compiler_params=pltpu.CompilerParams(
            dimension_semantics=("parallel", "arbitrary")),  # time is sequential
    )(enc3, act3, wih, whh, bih, bhh, w_heads, b_heads, scal)

    logp = logp3[:L, :B, 0]
    val = val3[:L, :B, 0]

    # Normal entropy is data-independent -> computed once in the wrapper.
    ent = jnp.broadcast_to(
        0.5 + 0.5 * math.log(2.0 * math.pi) + p['log_std'][0], (L, B))
    return logp, val, ent


# --------------------------------------------------------------------------
# Deterministic parameter init (shapes from ActorCritic.__init__)
# --------------------------------------------------------------------------
def init_params(key, feature_dim, state_dim, hidden):
    fc_in = state_dim * 32 // feature_dim
    ks = jax.random.split(key, 9)

    def rnd(k, shape, fan_in):
        return jax.random.normal(k, shape, jnp.float32) / jnp.sqrt(jnp.float32(fan_in))

    return {
        'hidden': hidden,
        'conv_w': rnd(ks[0], (32, feature_dim, 1, 1), feature_dim),
        'fc1_w': rnd(ks[1], (hidden, fc_in), fc_in),
        'fc1_b': rnd(ks[2], (hidden,), fc_in),
        'w_ih': rnd(ks[3], (3 * hidden, hidden), hidden),
        'b_ih': rnd(ks[4], (3 * hidden,), hidden),
        'w_hh': rnd(ks[5], (3 * hidden, hidden), hidden),
        'b_hh': rnd(ks[6], (3 * hidden,), hidden),
        'actor_w': rnd(ks[7], (1, hidden), hidden),
        'actor_b': jnp.zeros((1,), jnp.float32),
        'critic_w': rnd(ks[8], (1, hidden), hidden),
        'critic_b': jnp.zeros((1,), jnp.float32),
        # nn.Parameter(torch.full((1,), action_std)); dist scale = exp(param)
        'log_std': jnp.full((1,), 0.1, jnp.float32),
    }


# --------------------------------------------------------------------------
# Pure-JAX reference (mirrors ActorCritic.evaluate) for verification
# --------------------------------------------------------------------------
def reference_evaluate(state, action, p):
    L, B, C, H, W = state.shape
    Hd = p['hidden']
    x = state.reshape(L * B, C, H, W)
    y = jnp.einsum('oc,nchw->nohw', p['conv_w'][:, :, 0, 0], x)
    y = jnp.maximum(y, 0.0).reshape(L * B, 32 * H * W)
    h1 = jnp.maximum(y @ p['fc1_w'].T + p['fc1_b'], 0.0).reshape(L, B, Hd)

    def step(h, xt):
        gi = xt @ p['w_ih'].T + p['b_ih']
        gh = h @ p['w_hh'].T + p['b_hh']
        r = jax.nn.sigmoid(gi[:, :Hd] + gh[:, :Hd])
        z = jax.nn.sigmoid(gi[:, Hd:2 * Hd] + gh[:, Hd:2 * Hd])
        n = jnp.tanh(gi[:, 2 * Hd:] + r * gh[:, 2 * Hd:])
        h_new = (1.0 - z) * n + z * h
        return h_new, h_new

    _, outs = jax.lax.scan(step, jnp.zeros((B, Hd), jnp.float32), h1)
    s = outs.reshape(L * B, Hd)
    action_mean = jax.nn.sigmoid(s @ p['actor_w'].T + p['actor_b'])
    value = s @ p['critic_w'].T + p['critic_b']
    log_std = p['log_std'][0]
    sigma = jnp.exp(log_std)
    a = action.reshape(L * B, 1)
    logp = -0.5 * ((a - action_mean) / sigma) ** 2 - log_std - 0.5 * jnp.log(2.0 * jnp.pi)
    ent = 0.5 + 0.5 * jnp.log(2.0 * jnp.pi) + log_std
    return (logp.reshape(L, B), value.reshape(L, B),
            jnp.broadcast_to(ent, (L, B)))


# TODO(synk): act(training=True) draws dist.sample() and appends to an external
# Memory object (host-side side effects / RNG sampling) — not part of the kernel.
if __name__ == "__main__":
    feature_dim = 4
    ratio = 4                                   # feature_ratio = sqrt(state_dim/feature_dim)
    state_dim = feature_dim * ratio * ratio     # 64
    hidden_state_dim = 32
    L, B = 8, 2

    key = jax.random.PRNGKey(0)
    kp, ks, ka = jax.random.split(key, 3)
    params = init_params(kp, feature_dim, state_dim, hidden_state_dim)
    state = jax.random.normal(ks, (L, B, feature_dim, ratio, ratio), jnp.float32)
    action = jax.random.uniform(ka, (L, B), jnp.float32)

    logp, val, ent = actor_critic_evaluate(state, action, params)
    jax.block_until_ready((logp, val, ent))

    r_logp, r_val, r_ent = reference_evaluate(state, action, params)
    assert logp.shape == (L, B) and val.shape == (L, B) and ent.shape == (L, B)
    assert jnp.allclose(logp, r_logp, rtol=2e-3, atol=2e-3)
    assert jnp.allclose(val, r_val, rtol=2e-3, atol=2e-3)
    assert jnp.allclose(ent, r_ent, rtol=2e-3, atol=2e-3)
    print("KERNEL_OK")
</pallas_src>

<mosaic_0001>
module attributes {stable_mosaic.version = 11 : i64} {
  func.func @_probe(%arg0: i32, %arg1: memref<8x128xf32, #tpu.memory_space<vmem>>, %arg2: memref<8x128xf32, #tpu.memory_space<vmem>>, %arg3: memref<8x128xf32, #tpu.memory_space<vmem>>) attributes {dimension_semantics = [#tpu.dimension_semantics<arbitrary>], iteration_bounds = array<i64: 2>, scalar_prefetch = 0 : i64, scratch_operands = 0 : i64, tpu.core_type = #tpu.core_type<tc>, window_params = [{pipeline_mode = #tpu.pipeline_mode<synchronous>, transform_indices = @transform_0, window_bounds = array<i64: 8, 128>}, {transform_indices = @transform_1, window_bounds = array<i64: 8, 128>}, {transform_indices = @transform_2, window_bounds = array<i64: 8, 128>}]} {
    %c0 = arith.constant 0 : index
    %c0_0 = arith.constant 0 : index
    %0 = vector.load %arg1[%c0, %c0_0] : memref<8x128xf32, #tpu.memory_space<vmem>>, vector<8x128xf32>
    %c0_1 = arith.constant 0 : index
    %c0_2 = arith.constant 0 : index
    %1 = vector.load %arg2[%c0_1, %c0_2] : memref<8x128xf32, #tpu.memory_space<vmem>>, vector<8x128xf32>
    %2 = arith.addf %0, %1 : vector<8x128xf32>
    %c0_3 = arith.constant 0 : index
    %c0_4 = arith.constant 0 : index
    %3 = vector.load %arg3[%c0_3, %c0_4] : memref<8x128xf32, #tpu.memory_space<vmem>>, vector<8x128xf32>
    tpu.vector_store %arg3[%c0_3, %c0_4], %2 {strides = array<i32>} : memref<8x128xf32, #tpu.memory_space<vmem>>, vector<8x128xf32>,
    return
  }
  func.func @transform_0(%arg0: i32) -> (i32, i32) {
    %c0_i32 = arith.constant 0 : i32
    %c0_i32_0 = arith.constant 0 : i32
    %c0_i32_1 = arith.constant 0 : i32
    return %c0_i32, %c0_i32_0 : i32, i32
  }
  func.func @transform_1(%arg0: i32) -> (i32, i32) {
    %c0_i32 = arith.constant 0 : i32
    %c0_i32_0 = arith.constant 0 : i32
    return %arg0, %c0_i32 : i32, i32
  }
  func.func @transform_2(%arg0: i32) -> (i32, i32) {
    %c0_i32 = arith.constant 0 : i32
    %c0_i32_0 = arith.constant 0 : i32
    return %arg0, %c0_i32 : i32, i32
  }
}

module attributes {stable_mosaic.version = 11 : i64} {
  func.func @encoder_kernel(%arg0: i32, %arg1: memref<32x64xf32, #tpu.memory_space<vmem>>, %arg2: memref<64x512xf32, #tpu.memory_space<vmem>>, %arg3: memref<512x128xf32, #tpu.memory_space<vmem>>, %arg4: memref<1x128xf32, #tpu.memory_space<vmem>>, %arg5: memref<32x128xf32, #tpu.memory_space<vmem>>) attributes {dimension_semantics = [#tpu.dimension_semantics<parallel>], iteration_bounds = array<i64: 2>, scalar_prefetch = 0 : i64, scratch_operands = 0 : i64, tpu.core_type = #tpu.core_type<tc>, window_params = [{transform_indices = @transform_0, window_bounds = array<i64: 32, 64>}, {pipeline_mode = #tpu.pipeline_mode<synchronous>, transform_indices = @transform_1, window_bounds = array<i64: 64, 512>}, {pipeline_mode = #tpu.pipeline_mode<synchronous>, transform_indices = @transform_2, window_bounds = array<i64: 512, 128>}, {pipeline_mode = #tpu.pipeline_mode<synchronous>, transform_indices = @transform_3, window_bounds = array<i64: 1, 128>}, {transform_indices = @transform_4, window_bounds = array<i64: 32, 128>}]} {
    %c0 = arith.constant 0 : index
    %c0_0 = arith.constant 0 : index
    %0 = vector.load %arg1[%c0, %c0_0] : memref<32x64xf32, #tpu.memory_space<vmem>>, vector<32x64xf32>
    %c0_1 = arith.constant 0 : index
    %c0_2 = arith.constant 0 : index
    %1 = vector.load %arg2[%c0_1, %c0_2] : memref<64x512xf32, #tpu.memory_space<vmem>>, vector<64x512xf32>
    %cst = arith.constant dense<0.000000e+00> : vector<32x512xf32>
    %2 = tpu.matmul %0, %1, %cst {dimension_numbers = #tpu.dot_dimension_numbers<[1], [0], [0], [1], [0, 0, 1, 1], [], []>} : vector<32x64xf32>, vector<64x512xf32>, vector<32x512xf32> -> vector<32x512xf32>
    %cst_3 = arith.constant 0.000000e+00 : f32
    %3 = vector.broadcast %cst_3 : f32 to vector<32x512xf32>
    %4 = arith.maximumf %2, %3 : vector<32x512xf32>
    %c0_4 = arith.constant 0 : index
    %c0_5 = arith.constant 0 : index
    %5 = vector.load %arg3[%c0_4, %c0_5] : memref<512x128xf32, #tpu.memory_space<vmem>>, vector<512x128xf32>
    %cst_6 = arith.constant dense<0.000000e+00> : vector<32x128xf32>
    %6 = tpu.matmul %4, %5, %cst_6 {dimension_numbers = #tpu.dot_dimension_numbers<[1], [0], [0], [1], [0, 0, 1, 1], [], []>} : vector<32x512xf32>, vector<512x128xf32>, vector<32x128xf32> -> vector<32x128xf32>
    %c0_7 = arith.constant 0 : index
    %c0_8 = arith.constant 0 : index
    %7 = vector.load %arg4[%c0_7, %c0_8] : memref<1x128xf32, #tpu.memory_space<vmem>>, vector<1x128xf32>
    %8 = vector.broadcast %7 : vector<1x128xf32> to vector<32x128xf32>
    %9 = arith.addf %6, %8 : vector<32x128xf32>
    %cst_9 = arith.constant 0.000000e+00 : f32
    %10 = vector.broadcast %cst_9 : f32 to vector<32x128xf32>
    %11 = arith.maximumf %9, %10 : vector<32x128xf32>
    %c0_10 = arith.constant 0 : index
    %c0_11 = arith.constant 0 : index
    %12 = vector.load %arg5[%c0_10, %c0_11] : memref<32x128xf32, #tpu.memory_space<vmem>>, vector<32x128xf32>
    tpu.vector_store %arg5[%c0_10, %c0_11], %11 {strides = array<i32>} : memref<32x128xf32, #tpu.memory_space<vmem>>, vector<32x128xf32>,
    return
  }
  func.func @transform_0(%arg0: i32) -> (i32, i32) {
    %c0_i32 = arith.constant 0 : i32
    %c0_i32_0 = arith.constant 0 : i32
    return %arg0, %c0_i32 : i32, i32
  }
  func.func @transform_1(%arg0: i32) -> (i32, i32) {
    %c0_i32 = arith.constant 0 : i32
    %c0_i32_0 = arith.constant 0 : i32
    %c0_i32_1 = arith.constant 0 : i32
    return %c0_i32, %c0_i32_0 : i32, i32
  }
  func.func @transform_2(%arg0: i32) -> (i32, i32) {
    %c0_i32 = arith.constant 0 : i32
    %c0_i32_0 = arith.constant 0 : i32
    %c0_i32_1 = arith.constant 0 : i32
    return %c0_i32, %c0_i32_0 : i32, i32
  }
  func.func @transform_3(%arg0: i32) -> (i32, i32) {
    %c0_i32 = arith.constant 0 : i32
    %c0_i32_0 = arith.constant 0 : i32
    %c0_i32_1 = arith.constant 0 : i32
    return %c0_i32, %c0_i32_0 : i32, i32
  }
  func.func @transform_4(%arg0: i32) -> (i32, i32) {
    %c0_i32 = arith.constant 0 : i32
    %c0_i32_0 = arith.constant 0 : i32
    return %arg0, %c0_i32 : i32, i32
  }
}

</mosaic_0001>

<llo_original>
// kernel: tpu_custom_call.1
$region0: #{tpu_custom_call.1}
  #allocation0 [shape = 'u32[]', space=smem, size = 0x4, offset = 0x4, fixed_abs, tag = 'smem constant byte address 0x4 - core index']
  #allocation1 [shape = 'u32[144,128]{1,0:T(1,128)}', space=vmem, size = 0x12000, scoped, tag = 'internal scratch']
  %s0 = inlined_call_operand.hbm [shape: f32[8,128], index: 0, kind: input, shape index: {}]
  %s1 = inlined_call_operand.hbm [shape: f32[16,128], index: 1, kind: input, shape index: {}]
  %s2 = inlined_call_operand.hbm [shape: f32[16,128], index: 2, kind: output, shape index: {}]
  %s3 = sld [smem:[#allocation0]]
  $region49: #{tpu_custom_call.1} parent=0
    _
  %s5 = ssub.s32 1, %s3
  %s6 = scalar_select 0, %s5, %s3
  $region1: #{tpu_custom_call.1} parent=0
    #allocation2 [shape = 'u8[4096]{0}', space=vmem, size = 0x1000, scoped, tag = 'input window, operand 0, single buffered']
    #allocation3 [shape = 's32[2]{0}', space=sflag, size = 0x8, scoped, tag = 'scoped memory for tpu_custom_call.1']
    #allocation4 [shape = 's32[2]{0}', space=sflag, size = 0x8, scoped, tag = 'scoped memory for tpu_custom_call.1']
    #allocation5 [shape = 'u8[8192]{0}', space=vmem, size = 0x2000, scoped, tag = 'input window, operand 1']
    #allocation6 [shape = 's32[2]{0}', space=sflag, size = 0x8, scoped, tag = 'scoped memory for tpu_custom_call.1']
    #allocation7 [shape = 'u8[8192]{0}', space=vmem, size = 0x2000, scoped, tag = 'output window, operand 0']
    %7 = vsyncpa [#allocation3], 0
    %8 = vsyncpa [#allocation6], 0
    %s9 = scalar_lea.sflag [#allocation6], 1
    %10 = vsyncpa %s9, 0
    %11 = vsyncpa [#allocation4], 0
    %s12 = scalar_lea.sflag [#allocation4], 1
    %13 = vsyncpa %s12, 0
    loop: start=0, step=1, limit=4
    $region2: #{tpu_custom_call.1} parent=1 // loop_pre_header
      _
    $region3: #{tpu_custom_call.1} parent=1 // loop_header
      %s15 = sphi 0, %s19
      %p16 = scmp.ge.s32.totalorder %s15, 4
      %s23 = sphi 0, %s23
      %s25 = sphi 0, %s23
      %s26 = sphi 0, %s25
      %s40 = sphi 0, %s26
      %s46 = sphi 0, %s48
      %s49 = sphi 0, %s46
      %s50 = sphi 0, %s49
      %s66 = sphi 0, %s50
      %s72 = sphi 0, %s74
      %s75 = sphi 0, %s72
      %s76 = sphi 0, %s75
      %s92 = sphi 0, %s76
    $region4: #{tpu_custom_call.1} parent=1 // loop_header_branch
      %18 = sbr.rel (%p16) target = $region8
    $region5: #{tpu_custom_call.1} parent=1 // loop_body
      %s20 = ssub.s32 %s15, 1
      %s21 = ssub.s32 %s15, 2
      %s22 = sadd.s32 %s15, 1
      %s24 = sadd.s32 %s23, 1
      %p27 = scmp.eq.s32.totalorder %s15, 1
      %p28 = scmp.ne.s32.totalorder %s23, %s25
      %p29 = scmp.eq.s32.totalorder %s15, 0
      %p30 = por %p28, %p29
      %p31 = scmp.ne.s32.totalorder %s23, %s25
      %p32 = scmp.eq.s32.totalorder %s20, 1
      %p33 = por %p31, %p32
      %p34 = scmp.ne.s32.totalorder %s25, %s26
      %p35 = scmp.eq.s32.totalorder %s20, 0
      %p36 = por %p34, %p35
      %p37 = scmp.ne.s32.totalorder %s25, %s26
      %p38 = scmp.eq.s32.totalorder %s21, 1
      %p39 = por %p37, %p38
      %p41 = scmp.ne.s32.totalorder %s26, %s40
      %p42 = scmp.eq.s32.totalorder %s21, 0
      %p43 = por %p41, %p42
      %s44 = ssub.s32 %s15, %s22
      %p45 = scmp.eq.s32.totalorder %s44, 0
      %s47 = sadd.s32 %s46, 1
      %s48 = scalar_select %p45, %s46, %s47
      %p51 = pneg %p45
      %p52 = scmp.eq.s32.totalorder %s15, 1
      %p53 = por %p51, %p52
      %p54 = scmp.ne.s32.totalorder %s46, %s49
      %p55 = scmp.eq.s32.totalorder %s15, 0
      %p56 = por %p54, %p55
      %p57 = scmp.ne.s32.totalorder %s46, %s49
      %p58 = scmp.eq.s32.totalorder %s20, 1
      %p59 = por %p57, %p58
      %p60 = scmp.ne.s32.totalorder %s49, %s50
      %p61 = scmp.eq.s32.totalorder %s20, 0
      %p62 = por %p60, %p61
      %p63 = scmp.ne.s32.totalorder %s49, %s50
      %p64 = scmp.eq.s32.totalorder %s21, 1
      %p65 = por %p63, %p64
      %p67 = scmp.ne.s32.totalorder %s50, %s66
      %p68 = scmp.eq.s32.totalorder %s21, 0
      %p69 = por %p67, %p68
      %s70 = ssub.s32 %s15, %s22
      %p71 = scmp.eq.s32.totalorder %s70, 0
      %s73 = sadd.s32 %s72, 1
      %s74 = scalar_select %p71, %s72, %s73
      %p77 = pneg %p71
      %p78 = scmp.eq.s32.totalorder %s15, 1
      %p79 = por %p77, %p78
      %p80 = scmp.ne.s32.totalorder %s72, %s75
      %p81 = scmp.eq.s32.totalorder %s15, 0
      %p82 = por %p80, %p81
      %p83 = scmp.ne.s32.totalorder %s72, %s75
      %p84 = scmp.eq.s32.totalorder %s20, 1
      %p85 = por %p83, %p84
      %p86 = scmp.ne.s32.totalorder %s75, %s76
      %p87 = scmp.eq.s32.totalorder %s20, 0
      %p88 = por %p86, %p87
      %p89 = scmp.ne.s32.totalorder %s75, %s76
      %p90 = scmp.eq.s32.totalorder %s21, 1
      %p91 = por %p89, %p90
      %p93 = scmp.ne.s32.totalorder %s76, %s92
      %p94 = scmp.eq.s32.totalorder %s21, 0
      %p95 = por %p93, %p94
      %p96 = scmp.le.s32.totalorder 1, %s15
      %p97 = scmp.lt.s32.totalorder %s15, 3
      %p98 = pnand %p96, %p97
      %p99 = pneg %p98
      // Predicated region
      $region9: #{tpu_custom_call.1} parent=5 // pred_check
        _
      $region10: #{tpu_custom_call.1} parent=5 // pred_check_branch
        %101 = sbr.rel (%p98) target = $region12
      $region11: #{tpu_custom_call.1} parent=5 // pred_region
        %s102 = ssub.s32 %s15, 1
        // Predicated region
        $region13: #{tpu_custom_call.1} parent=11 // pred_check
          %p103 = pneg %p36
        $region14: #{tpu_custom_call.1} parent=11 // pred_check_branch
          %105 = sbr.rel (%p103) target = $region16
        $region15: #{tpu_custom_call.1} parent=11 // pred_region
          %s107 = ssub.s32 128, 128
          %108 = vsyncadd [#allocation3], %s107
          %s110 = sshll.u32 [#allocation2], 4
          %s111 = int_to_ptr.vmem [resolvable:$true] %s110
          %113 = dma.hbm_to_vmem [thread:$0]  %s0, 128, %s111, [#allocation3]
        $region16: #{tpu_custom_call.1} parent=11 // pred_fallthru
          _
      $region12: #{tpu_custom_call.1} parent=5 // pred_fallthru
        _
      %p114 = scmp.lt.s32.totalorder %s15, 2
      // Predicated region
      $region17: #{tpu_custom_call.1} parent=5 // pred_check
        %p115 = pneg %p114
      $region18: #{tpu_custom_call.1} parent=5 // pred_check_branch
        %117 = sbr.rel (%p115) target = $region20
      $region19: #{tpu_custom_call.1} parent=5 // pred_region
        // Predicated region
        $region21: #{tpu_custom_call.1} parent=19 // pred_check
          %p118 = pneg %p56
        $region22: #{tpu_custom_call.1} parent=19 // pred_check_branch
          %120 = sbr.rel (%p118) target = $region24
        $region23: #{tpu_custom_call.1} parent=19 // pred_region
          %s121 = sand.u32 %s46, 1
          %s122 = scalar_lea.sflag [#allocation6], %s121
          %s123 = sand.u32 %s46, 1
          %s124 = smul.addr %s123, 8
          %s125 = scalar_lea.vmem [#allocation5], %s124
          %s127 = ssub.s32 128, 128
          %128 = vsyncadd %s122, %s127
          %s129 = smul.addr %s15, 128
          %s130 = scalar_lea.hbm %s1, %s129
          %s132 = sshll.u32 %s125, 4
          %s133 = int_to_ptr.vmem [resolvable:$true] %s132
          %135 = dma.hbm_to_vmem [thread:$0]  %s130, 128, %s133, %s122
        $region24: #{tpu_custom_call.1} parent=19 // pred_fallthru
          _
      $region20: #{tpu_custom_call.1} parent=5 // pred_fallthru
        _
      %p136 = scmp.le.s32.totalorder 1, %s15
      %p137 = scmp.lt.s32.totalorder %s15, 3
      %p138 = pnand %p136, %p137
      %p139 = pneg %p138
      // Predicated region
      $region25: #{tpu_custom_call.1} parent=5 // pred_check
        _
      $region26: #{tpu_custom_call.1} parent=5 // pred_check_branch
        %141 = sbr.rel (%p138) target = $region28
      $region27: #{tpu_custom_call.1} parent=5 // pred_region
        %s142 = ssub.s32 %s15, 1
        // Predicated region
        $region29: #{tpu_custom_call.1} parent=27 // pred_check
          %p143 = pneg %p36
        $region30: #{tpu_custom_call.1} parent=27 // pred_check_branch
          %145 = sbr.rel (%p143) target = $region32
        $region31: #{tpu_custom_call.1} parent=27 // pred_region
          %146 = dma.done [#allocation3], 128
        $region32: #{tpu_custom_call.1} parent=27 // pred_fallthru
          _
        %s147 = sand.u32 %s49, 1
        %s148 = scalar_lea.sflag [#allocation6], %s147
        %s149 = sand.u32 %s49, 1
        %s150 = smul.addr %s149, 8
        %s151 = scalar_lea.vmem [#allocation5], %s150
        // Predicated region
        $region33: #{tpu_custom_call.1} parent=27 // pred_check
          %p152 = pneg %p62
        $region34: #{tpu_custom_call.1} parent=27 // pred_check_branch
          %154 = sbr.rel (%p152) target = $region36
        $region35: #{tpu_custom_call.1} parent=27 // pred_region
          %155 = dma.done %s148, 128
        $region36: #{tpu_custom_call.1} parent=27 // pred_fallthru
          _
        %p156 = pneg %p36
        %p157 = pneg %p33
        %s158 = sand.u32 %s49, 1
        %s159 = scalar_lea.sflag [#allocation6], %s158
        %s160 = sand.u32 %s49, 1
        %s161 = smul.addr %s160, 8
        %s162 = scalar_lea.vmem [#allocation5], %s161
        %p163 = pneg %p62
        %p164 = pneg %p59
        %p165 = pneg %p88
        %p166 = pneg %p85
        %s167 = sand.u32 %s75, 1
        %s168 = scalar_lea.sflag [#allocation4], %s167
        %s169 = sand.u32 %s75, 1
        %s170 = smul.addr %s169, 8
        %s171 = scalar_lea.vmem [#allocation7], %s170
        %v172 = vld [vmem:[#allocation2] sm:$0xff]
        %v173 = vld [vmem:[%s151] sm:$0xff]
        %v174 = vadd.f32 %v172, %v173
        %175 = vst [vmem:[%s171] sm:$0xff] %v174
        %s176 = sand.u32 %s75, 1
        %s177 = scalar_lea.sflag [#allocation4], %s176
        %s178 = sand.u32 %s75, 1
        %s179 = smul.addr %s178, 8
        %s180 = scalar_lea.vmem [#allocation7], %s179
        // Predicated region
        $region37: #{tpu_custom_call.1} parent=27 // pred_check
          %p181 = pneg %p85
        $region38: #{tpu_custom_call.1} parent=27 // pred_check_branch
          %183 = sbr.rel (%p181) target = $region40
        $region39: #{tpu_custom_call.1} parent=27 // pred_region
          %s185 = ssub.s32 128, 128
          %186 = vsyncadd %s177, %s185
          %s187 = smul.addr %s20, 128
          %s188 = scalar_lea.hbm %s2, %s187
          %s190 = sshll.u32 %s180, 4
          %s191 = int_to_ptr.vmem [resolvable:$true] %s190
          %193 = dma.vmem_to_hbm [thread:$0]  %s191, 128, %s188, %s177
        $region40: #{tpu_custom_call.1} parent=27 // pred_fallthru
          _
      $region28: #{tpu_custom_call.1} parent=5 // pred_fallthru
        _
      %p194 = scmp.le.s32.totalorder 2, %s15
      // Predicated region
      $region41: #{tpu_custom_call.1} parent=5 // pred_check
        %p195 = pneg %p194
      $region42: #{tpu_custom_call.1} parent=5 // pred_check_branch
        %197 = sbr.rel (%p195) target = $region44
      $region43: #{tpu_custom_call.1} parent=5 // pred_region
        %s198 = ssub.s32 %s15, 2
        // Predicated region
        $region45: #{tpu_custom_call.1} parent=43 // pred_check
          %p199 = pneg %p91
        $region46: #{tpu_custom_call.1} parent=43 // pred_check_branch
          %201 = sbr.rel (%p199) target = $region48
        $region47: #{tpu_custom_call.1} parent=43 // pred_region
          %s202 = sand.u32 %s76, 1
          %s203 = scalar_lea.sflag [#allocation4], %s202
          %s204 = sand.u32 %s76, 1
          %s205 = smul.addr %s204, 8
          %s206 = scalar_lea.vmem [#allocation7], %s205
          %207 = dma.done %s203, 128
        $region48: #{tpu_custom_call.1} parent=43 // pred_fallthru
          _
      $region44: #{tpu_custom_call.1} parent=5 // pred_fallthru
        _
    $region6: #{tpu_custom_call.1} parent=1 // loop_footer
      %s19 = sadd.s32 1, %s15
    $region7: #{tpu_custom_call.1} parent=1 // loop_footer_branch
      %14 = sbr.rel target = $region3
    $region8: #{tpu_custom_call.1} parent=1 // loop_exit
      _
    %208 = vsyncpa [#allocation3], 1
    %s209 = scalar_lea.sflag [#allocation3], 1
    %210 = vsyncpa %s209, 1
    %211 = vsyncpa [#allocation6], 1
    %s212 = scalar_lea.sflag [#allocation6], 1
    %213 = vsyncpa %s212, 1
    %214 = vsyncpa [#allocation4], 1
    %s215 = scalar_lea.sflag [#allocation4], 1
    %216 = vsyncpa %s215, 1

// kernel: tpu_custom_call.1
$region0: #{tpu_custom_call.1}
  #allocation0 [shape = 'u32[]', space=smem, size = 0x4, offset = 0x4, fixed_abs, tag = 'smem constant byte address 0x4 - core index']
  #allocation1 [shape = 'u32[144,128]{1,0:T(1,128)}', space=vmem, size = 0x12000, scoped, tag = 'internal scratch']
  %s0 = inlined_call_operand.hbm [shape: f32[64,64], index: 0, kind: input, shape index: {}]
  %s1 = inlined_call_operand.hbm [shape: f32[64,512], index: 1, kind: input, shape index: {}]
  %s2 = inlined_call_operand.hbm [shape: f32[512,128], index: 2, kind: input, shape index: {}]
  %s3 = inlined_call_operand.vmem [shape: f32[1,128], index: 3, kind: input, shape index: {}]
  %s4 = inlined_call_operand.hbm [shape: f32[64,128], index: 4, kind: output, shape index: {}]
  %s5 = sld [smem:[#allocation0]]
  $region61: #{tpu_custom_call.1} parent=0
    _
  %s7 = ssub.s32 1, %s5
  %s8 = scalar_select 0, %s7, %s5
  $region1: #{tpu_custom_call.1} parent=0
    #allocation2 [shape = 'u8[32768]{0}', space=vmem, size = 0x8000, scoped, tag = 'input window, operand 0']
    #allocation3 [shape = 's32[2]{0}', space=sflag, size = 0x8, scoped, tag = 'scoped memory for tpu_custom_call.1']
    #allocation4 [shape = 's32[2]{0}', space=sflag, size = 0x8, scoped, tag = 'scoped memory for tpu_custom_call.1']
    #allocation5 [shape = 'u8[131072]{0}', space=vmem, size = 0x20000, scoped, tag = 'input window, operand 1, single buffered']
    #allocation6 [shape = 's32[1]{0}', space=sflag, size = 0x4, scoped, tag = 'scoped memory for tpu_custom_call.1']
    #allocation7 [shape = 'u8[262144]{0}', space=vmem, size = 0x40000, scoped, tag = 'input window, operand 2, single buffered']
    #allocation8 [shape = 'u8[32768]{0}', space=vmem, size = 0x8000, scoped, tag = 'output window, operand 0']
    %9 = vsyncpa [#allocation3], 0
    %s10 = scalar_lea.sflag [#allocation3], 1
    %11 = vsyncpa %s10, 0
    %12 = vsyncpa [#allocation6], 0
    %13 = vsyncpa [#allocation4], 0
    %s14 = scalar_lea.sflag [#allocation4], 1
    %15 = vsyncpa %s14, 0
    loop: start=0, step=1, limit=4
    $region2: #{tpu_custom_call.1} parent=1 // loop_pre_header
      _
    $region3: #{tpu_custom_call.1} parent=1 // loop_header
      %s17 = sphi 0, %s21
      %p18 = scmp.ge.s32.totalorder %s17, 4
      %s27 = sphi 0, %s29
      %s30 = sphi 0, %s27
      %s31 = sphi 0, %s30
      %s47 = sphi 0, %s31
      %s51 = sphi 0, %s51
      %s53 = sphi 0, %s51
      %s54 = sphi 0, %s53
      %s68 = sphi 0, %s54
      %s72 = sphi 0, %s72
      %s74 = sphi 0, %s72
      %s75 = sphi 0, %s74
      %s89 = sphi 0, %s75
      %s93 = sphi 0, %s93
      %s95 = sphi 0, %s93
      %s96 = sphi 0, %s95
      %s110 = sphi 0, %s96
      %s116 = sphi 0, %s118
      %s119 = sphi 0, %s116
      %s120 = sphi 0, %s119
      %s136 = sphi 0, %s120
    $region4: #{tpu_custom_call.1} parent=1 // loop_header_branch
      %20 = sbr.rel (%p18) target = $region8
    $region5: #{tpu_custom_call.1} parent=1 // loop_body
      %s22 = ssub.s32 %s17, 1
      %s23 = ssub.s32 %s17, 2
      %s24 = sadd.s32 %s17, 1
      %s25 = ssub.s32 %s17, %s24
      %p26 = scmp.eq.s32.totalorder %s25, 0
      %s28 = sadd.s32 %s27, 1
      %s29 = scalar_select %p26, %s27, %s28
      %p32 = pneg %p26
      %p33 = scmp.eq.s32.totalorder %s17, 1
      %p34 = por %p32, %p33
      %p35 = scmp.ne.s32.totalorder %s27, %s30
      %p36 = scmp.eq.s32.totalorder %s17, 0
      %p37 = por %p35, %p36
      %p38 = scmp.ne.s32.totalorder %s27, %s30
      %p39 = scmp.eq.s32.totalorder %s22, 1
      %p40 = por %p38, %p39
      %p41 = scmp.ne.s32.totalorder %s30, %s31
      %p42 = scmp.eq.s32.totalorder %s22, 0
      %p43 = por %p41, %p42
      %p44 = scmp.ne.s32.totalorder %s30, %s31
      %p45 = scmp.eq.s32.totalorder %s23, 1
      %p46 = por %p44, %p45
      %p48 = scmp.ne.s32.totalorder %s31, %s47
      %p49 = scmp.eq.s32.totalorder %s23, 0
      %p50 = por %p48, %p49
      %s52 = sadd.s32 %s51, 1
      %p55 = scmp.eq.s32.totalorder %s17, 1
      %p56 = scmp.ne.s32.totalorder %s51, %s53
      %p57 = scmp.eq.s32.totalorder %s17, 0
      %p58 = por %p56, %p57
      %p59 = scmp.ne.s32.totalorder %s51, %s53
      %p60 = scmp.eq.s32.totalorder %s22, 1
      %p61 = por %p59, %p60
      %p62 = scmp.ne.s32.totalorder %s53, %s54
      %p63 = scmp.eq.s32.totalorder %s22, 0
      %p64 = por %p62, %p63
      %p65 = scmp.ne.s32.totalorder %s53, %s54
      %p66 = scmp.eq.s32.totalorder %s23, 1
      %p67 = por %p65, %p66
      %p69 = scmp.ne.s32.totalorder %s54, %s68
      %p70 = scmp.eq.s32.totalorder %s23, 0
      %p71 = por %p69, %p70
      %s73 = sadd.s32 %s72, 1
      %p76 = scmp.eq.s32.totalorder %s17, 1
      %p77 = scmp.ne.s32.totalorder %s72, %s74
      %p78 = scmp.eq.s32.totalorder %s17, 0
      %p79 = por %p77, %p78
      %p80 = scmp.ne.s32.totalorder %s72, %s74
      %p81 = scmp.eq.s32.totalorder %s22, 1
      %p82 = por %p80, %p81
      %p83 = scmp.ne.s32.totalorder %s74, %s75
      %p84 = scmp.eq.s32.totalorder %s22, 0
      %p85 = por %p83, %p84
      %p86 = scmp.ne.s32.totalorder %s74, %s75
      %p87 = scmp.eq.s32.totalorder %s23, 1
      %p88 = por %p86, %p87
      %p90 = scmp.ne.s32.totalorder %s75, %s89
      %p91 = scmp.eq.s32.totalorder %s23, 0
      %p92 = por %p90, %p91
      %s94 = sadd.s32 %s93, 1
      %p97 = scmp.eq.s32.totalorder %s17, 1
      %p98 = scmp.ne.s32.totalorder %s93, %s95
      %p99 = scmp.eq.s32.totalorder %s17, 0
      %p100 = por %p98, %p99
      %p101 = scmp.ne.s32.totalorder %s93, %s95
      %p102 = scmp.eq.s32.totalorder %s22, 1
      %p103 = por %p101, %p102
      %p104 = scmp.ne.s32.totalorder %s95, %s96
      %p105 = scmp.eq.s32.totalorder %s22, 0
      %p106 = por %p104, %p105
      %p107 = scmp.ne.s32.totalorder %s95, %s96
      %p108 = scmp.eq.s32.totalorder %s23, 1
      %p109 = por %p107, %p108
      %p111 = scmp.ne.s32.totalorder %s96, %s110
      %p112 = scmp.eq.s32.totalorder %s23, 0
      %p113 = por %p111, %p112
      %s114 = ssub.s32 %s17, %s24
      %p115 = scmp.eq.s32.totalorder %s114, 0
      %s117 = sadd.s32 %s116, 1
      %s118 = scalar_select %p115, %s116, %s117
      %p121 = pneg %p115
      %p122 = scmp.eq.s32.totalorder %s17, 1
      %p123 = por %p121, %p122
      %p124 = scmp.ne.s32.totalorder %s116, %s119
      %p125 = scmp.eq.s32.totalorder %s17, 0
      %p126 = por %p124, %p125
      %p127 = scmp.ne.s32.totalorder %s116, %s119
      %p128 = scmp.eq.s32.totalorder %s22, 1
      %p129 = por %p127, %p128
      %p130 = scmp.ne.s32.totalorder %s119, %s120
      %p131 = scmp.eq.s32.totalorder %s22, 0
      %p132 = por %p130, %p131
      %p133 = scmp.ne.s32.totalorder %s119, %s120
      %p134 = scmp.eq.s32.totalorder %s23, 1
      %p135 = por %p133, %p134
      %p137 = scmp.ne.s32.totalorder %s120, %s136
      %p138 = scmp.eq.s32.totalorder %s23, 0
      %p139 = por %p137, %p138
      %p140 = scmp.le.s32.totalorder 1, %s17
      %p141 = scmp.lt.s32.totalorder %s17, 3
      %p142 = pnand %p140, %p141
      %p143 = pneg %p142
      // Predicated region
      $region9: #{tpu_custom_call.1} parent=5 // pred_check
        _
      $region10: #{tpu_custom_call.1} parent=5 // pred_check_branch
        %145 = sbr.rel (%p142) target = $region12
      $region11: #{tpu_custom_call.1} parent=5 // pred_region
        %s146 = ssub.s32 %s17, 1
        // Predicated region
        $region13: #{tpu_custom_call.1} parent=11 // pred_check
          %p147 = pneg %p64
        $region14: #{tpu_custom_call.1} parent=11 // pred_check_branch
          %149 = sbr.rel (%p147) target = $region16
        $region15: #{tpu_custom_call.1} parent=11 // pred_region
          %s151 = ssub.s32 4096, 4096
          %152 = vsyncadd [#allocation6], %s151
          %s153 = sshll.u32 [#allocation5], 4
          %s154 = int_to_ptr.vmem [resolvable:$true] %s153
          %159 = dma.hbm_to_vmem [thread:$0]  %s1, 4096, %s154, [#allocation6], 512, 512, 32
        $region16: #{tpu_custom_call.1} parent=11 // pred_fallthru
          _
        // Predicated region
        $region17: #{tpu_custom_call.1} parent=11 // pred_check
          %p160 = pneg %p85
        $region18: #{tpu_custom_call.1} parent=11 // pred_check_branch
          %162 = sbr.rel (%p160) target = $region20
        $region19: #{tpu_custom_call.1} parent=11 // pred_region
          %s164 = ssub.s32 8192, 8192
          %165 = vsyncadd [#allocation6], %s164
          %s166 = sshll.u32 [#allocation7], 4
          %s167 = int_to_ptr.vmem [resolvable:$true] %s166
          %172 = dma.hbm_to_vmem [thread:$0]  %s2, 8192, %s167, [#allocation6], 128, 128, 8
        $region20: #{tpu_custom_call.1} parent=11 // pred_fallthru
          _
        // Predicated region
        $region21: #{tpu_custom_call.1} parent=11 // pred_check
          %p173 = pneg %p106
        $region22: #{tpu_custom_call.1} parent=11 // pred_check_branch
          %175 = sbr.rel (%p173) target = $region24
        $region23: #{tpu_custom_call.1} parent=11 // pred_region
          _
        $region24: #{tpu_custom_call.1} parent=11 // pred_fallthru
          _
      $region12: #{tpu_custom_call.1} parent=5 // pred_fallthru
        _
      %p176 = scmp.lt.s32.totalorder %s17, 2
      // Predicated region
      $region25: #{tpu_custom_call.1} parent=5 // pred_check
        %p177 = pneg %p176
      $region26: #{tpu_custom_call.1} parent=5 // pred_check_branch
        %179 = sbr.rel (%p177) target = $region28
      $region27: #{tpu_custom_call.1} parent=5 // pred_region
        // Predicated region
        $region29: #{tpu_custom_call.1} parent=27 // pred_check
          %p180 = pneg %p37
        $region30: #{tpu_custom_call.1} parent=27 // pred_check_branch
          %182 = sbr.rel (%p180) target = $region32
        $region31: #{tpu_custom_call.1} parent=27 // pred_region
          %s183 = sand.u32 %s27, 1
          %s184 = scalar_lea.sflag [#allocation3], %s183
          %s185 = sand.u32 %s27, 1
          %s186 = smul.addr %s185, 32
          %s187 = scalar_lea.vmem [#allocation2], %s186
          %s188 = smul.u32 4, %s17
          %s190 = ssub.s32 512, 512
          %191 = vsyncadd %s184, %s190
          %s192 = smul.addr %s188, 128
          %s193 = scalar_lea.hbm %s0, %s192
          %s194 = sshll.u32 %s187, 4
          %s195 = int_to_ptr.vmem [resolvable:$true] %s194
          %200 = dma.hbm_to_vmem [thread:$0]  %s193, 512, %s195, %s184, 128, 128, 8
        $region32: #{tpu_custom_call.1} parent=27 // pred_fallthru
          _
      $region28: #{tpu_custom_call.1} parent=5 // pred_fallthru
        _
      %p201 = scmp.le.s32.totalorder 1, %s17
      %p202 = scmp.lt.s32.totalorder %s17, 3
      %p203 = pnand %p201, %p202
      %p204 = pneg %p203
      // Predicated region
      $region33: #{tpu_custom_call.1} parent=5 // pred_check
        _
      $region34: #{tpu_custom_call.1} parent=5 // pred_check_branch
        %206 = sbr.rel (%p203) target = $region36
      $region35: #{tpu_custom_call.1} parent=5 // pred_region
        %s207 = ssub.s32 %s17, 1
        %s208 = sand.u32 %s30, 1
        %s209 = scalar_lea.sflag [#allocation3], %s208
        %s210 = sand.u32 %s30, 1
        %s211 = smul.addr %s210, 32
        %s212 = scalar_lea.vmem [#allocation2], %s211
        // Predicated region
        $region37: #{tpu_custom_call.1} parent=35 // pred_check
          %p213 = pneg %p43
        $region38: #{tpu_custom_call.1} parent=35 // pred_check_branch
          %215 = sbr.rel (%p213) target = $region40
        $region39: #{tpu_custom_call.1} parent=35 // pred_region
          %216 = dma.done %s209, 512
        $region40: #{tpu_custom_call.1} parent=35 // pred_fallthru
          _
        // Predicated region
        $region41: #{tpu_custom_call.1} parent=35 // pred_check
          %p217 = pneg %p64
        $region42: #{tpu_custom_call.1} parent=35 // pred_check_branch
          %219 = sbr.rel (%p217) target = $region44
        $region43: #{tpu_custom_call.1} parent=35 // pred_region
          %220 = dma.done [#allocation6], 4096
        $region44: #{tpu_custom_call.1} parent=35 // pred_fallthru
          _
        // Predicated region
        $region45: #{tpu_custom_call.1} parent=35 // pred_check
          %p221 = pneg %p85
        $region46: #{tpu_custom_call.1} parent=35 // pred_check_branch
          %223 = sbr.rel (%p221) target = $region48
        $region47: #{tpu_custom_call.1} parent=35 // pred_region
          %224 = dma.done [#allocation6], 8192
        $region48: #{tpu_custom_call.1} parent=35 // pred_fallthru
          _
        %s225 = sand.u32 %s30, 1
        %s226 = scalar_lea.sflag [#allocation3], %s225
        %s227 = sand.u32 %s30, 1
        %s228 = smul.addr %s227, 32
        %s229 = scalar_lea.vmem [#allocation2], %s228
        %p230 = pneg %p43
        %p231 = pneg %p40
        %p232 = pneg %p64
        %p233 = pneg %p61
        %p234 = pneg %p85
        %p235 = pneg %p82
        %p236 = pneg %p106
        %p237 = pneg %p103
        %p238 = pneg %p132
        %p239 = pneg %p129
        %s240 = sand.u32 %s119, 1
        %s241 = scalar_lea.sflag [#allocation4], %s240
        %s242 = sand.u32 %s119, 1
        %s243 = smul.addr %s242, 32
        %s244 = scalar_lea.vmem [#allocation8], %s243
        %s245 = smul.u32 4, %s22
        %s246 = smul.u32 4, %s22
        %v247 = vld [vmem:[%s212] sm:$0xff]
        %v248 = vld [vmem:[%s212 + $0x8] sm:$0xff]
        %v249 = vld [vmem:[%s212 + $0x10] sm:$0xff]
        %v250 = vld [vmem:[%s212 + $0x18] sm:$0xff]
        %v251 = vld [vmem:[#allocation5] sm:$0xff]
        %v252 = vld [vmem:[#allocation5 + $0x8] sm:$0xff]
        %v253 = vld [vmem:[#allocation5 + $0x10] sm:$0xff]
        %v254 = vld [vmem:[#allocation5 + $0x18] sm:$0xff]
        %v255 = vld [vmem:[#allocation5 + $0x20] sm:$0xff]
        %v256 = vld [vmem:[#allocation5 + $0x28] sm:$0xff]
        %v257 = vld [vmem:[#allocation5 + $0x30] sm:$0xff]
        %v258 = vld [vmem:[#allocation5 + $0x38] sm:$0xff]
        %v259 = vld [vmem:[#allocation5 + $0x40] sm:$0xff]
        %v260 = vld [vmem:[#allocation5 + $0x48] sm:$0xff]
        %v261 = vld [vmem:[#allocation5 + $0x50] sm:$0xff]
        %v262 = vld [vmem:[#allocation5 + $0x58] sm:$0xff]
        %v263 = vld [vmem:[#allocation5 + $0x60] sm:$0xff]
        %v264 = vld [vmem:[#allocation5 + $0x68] sm:$0xff]
        %v265 = vld [vmem:[#allocation5 + $0x70] sm:$0xff]
        %v266 = vld [vmem:[#allocation5 + $0x78] sm:$0xff]
        %v267 = vld [vmem:[#allocation5 + $0x80] sm:$0xff]
        %v268 = vld [vmem:[#allocation5 + $0x88] sm:$0xff]
        %v269 = vld [vmem:[#allocation5 + $0x90] sm:$0xff]
        %v270 = vld [vmem:[#allocation5 + $0x98] sm:$0xff]
        %v271 = vld [vmem:[#allocation5 + $0xa0] sm:$0xff]
        %v272 = vld [vmem:[#allocation5 + $0xa8] sm:$0xff]
        %v273 = vld [vmem:[#allocation5 + $0xb0] sm:$0xff]
        %v274 = vld [vmem:[#allocation5 + $0xb8] sm:$0xff]
        %v275 = vld [vmem:[#allocation5 + $0xc0] sm:$0xff]
        %v276 = vld [vmem:[#allocation5 + $0xc8] sm:$0xff]
        %v277 = vld [vmem:[#allocation5 + $0xd0] sm:$0xff]
        %v278 = vld [vmem:[#allocation5 + $0xd8] sm:$0xff]
        %v279 = vld [vmem:[#allocation5 + $0xe0] sm:$0xff]
        %v280 = vld [vmem:[#allocation5 + $0xe8] sm:$0xff]
        %v281 = vld [vmem:[#allocation5 + $0xf0] sm:$0xff]
        %v282 = vld [vmem:[#allocation5 + $0xf8] sm:$0xff]
        %vm283 = vcmask 523264
        %v285 = vsel %vm283, %v247, 0
        %v288 = vsel %vm283, %v248, 0
        %v291 = vsel %vm283, %v249, 0
        %v294 = vsel %vm283, %v250, 0
        %296 = vmatprep.subr.mxu0 %v252
        %297 = vmatpush1.msra.mxu0 %v251
        %298 = vmatprep.subr.mxu0 %v256
        %299 = vmatpush1.msra.mxu0 %v255
        %300 = vmatprep.subr.mxu0 %v260
        %301 = vmatpush1.msra.mxu0 %v259
        %302 = vmatprep.subr.mxu0 %v264
        %303 = vmatpush1.msra.mxu0 %v263
        %304 = vmatprep.subr.mxu0 %v268
        %305 = vmatpush1.msra.mxu0 %v267
        %306 = vmatprep.subr.mxu0 %v272
        %307 = vmatpush1.msra.mxu0 %v271
        %308 = vmatprep.subr.mxu0 %v276
        %309 = vmatpush1.msra.mxu0 %v275
        %310 = vmatprep.subr.mxu0 %v280
        %311 = vmatpush1.msra.mxu0 %v279
        %312 = vmatprep.subr.mxu0 0.0
        %313 = vmatpush1.msra.mxu0 0.0
        %314 = vmatprep.subr.mxu0 0.0
        %315 = vmatpush1.msra.mxu0 0.0
        %316 = vmatprep.subr.mxu0 0.0
        %317 = vmatpush1.msra.mxu0 0.0
        %318 = vmatprep.subr.mxu0 0.0
        %319 = vmatpush1.msra.mxu0 0.0
        %320 = vmatprep.subr.mxu0 0.0
        %321 = vmatpush1.msra.mxu0 0.0
        %322 = vmatprep.subr.mxu0 0.0
        %323 = vmatpush1.msra.mxu0 0.0
        %324 = vmatprep.subr.mxu0 0.0
        %325 = vmatpush1.msra.mxu0 0.0
        %326 = vmatprep.subr.mxu0 0.0
        %327 = vmatpush1.msra.mxu0 0.0
        %328 = vmatprep.subr.mxu0 0.0
        %329 = vmatpush1.msra.mxu0 0.0
        %330 = vmatprep.subr.mxu0 0.0
        %331 = vmatpush1.msra.mxu0 0.0
        %332 = vmatprep.subr.mxu0 0.0
        %333 = vmatpush1.msra.mxu0 0.0
        %334 = vmatprep.subr.mxu0 0.0
        %335 = vmatpush1.msra.mxu0 0.0
        %336 = vmatprep.subr.mxu0 0.0
        %337 = vmatpush1.msra.mxu0 0.0
        %338 = vmatprep.subr.mxu0 0.0
        %339 = vmatpush1.msra.mxu0 0.0
        %340 = vmatprep.subr.mxu0 0.0
        %341 = vmatpush1.msra.mxu0 0.0
        %342 = vmatprep.subr.mxu0 0.0
        %343 = vmatpush1.msra.mxu0 0.0
        %344 = vmatprep.subr.mxu0 0.0
        %345 = vmatpush1.msra.mxu0 0.0
        %346 = vmatprep.subr.mxu0 0.0
        %347 = vmatpush1.msra.mxu0 0.0
        %348 = vmatprep.subr.mxu0 0.0
        %349 = vmatpush1.msra.mxu0 0.0
        %350 = vmatprep.subr.mxu0 0.0
        %351 = vmatpush1.msra.mxu0 0.0
        %352 = vmatprep.subr.mxu0 0.0
        %353 = vmatpush1.msra.mxu0 0.0
        %354 = vmatprep.subr.mxu0 0.0
        %355 = vmatpush1.msra.mxu0 0.0
        %356 = vmatprep.subr.mxu0 0.0
        %357 = vmatpush1.msra.mxu0 0.0
        %358 = vmatprep.subr.mxu0 0.0
        %359 = vmatpush1.msra.mxu0 0.0
        %360 = vmatprep.mubr.f32.mxu0 0.0
        %361 = vmatmul.mubr.f32.gmra.mrb[0].mxu0 %v285
        %v362 = vpop.f32.mrb[0].mxu0
        %v363 = vadd.f32 0.0, %v362
        %v364 = vpop.f32.mrb[0].mxu0
        %v365 = vadd.f32 0.0, %v364
        %366 = vmatprep.mubr.f32.mxu0 0.0
        %367 = vmatmul.mubr.f32.gmra.mrb[0].mxu0 %v288
        %v368 = vpop.f32.mrb[0].mxu0
        %v369 = vadd.f32 0.0, %v368
        %v370 = vpop.f32.mrb[0].mxu0
        %v371 = vadd.f32 0.0, %v370
        %372 = vmatprep.mubr.f32.mxu0 0.0
        %373 = vmatmul.mubr.f32.gmra.mrb[0].mxu0 %v291
        %v374 = vpop.f32.mrb[0].mxu0
        %v375 = vadd.f32 0.0, %v374
        %v376 = vpop.f32.mrb[0].mxu0
        %v377 = vadd.f32 0.0, %v376
        %378 = vmatprep.mubr.f32.mxu0 0.0
        %379 = vmatmul.mubr.f32.gmra.mrb[0].mxu0 %v294
        %v380 = vpop.f32.mrb[0].mxu0
        %v381 = vadd.f32 0.0, %v380
        %v382 = vpop.f32.mrb[0].mxu0
        %v383 = vadd.f32 0.0, %v382
        %384 = vdwg.mxu0
        %385 = vmatprep.subr.mxu0 %v254
        %386 = vmatpush1.msra.mxu0 %v253
        %387 = vmatprep.subr.mxu0 %v258
        %388 = vmatpush1.msra.mxu0 %v257
        %389 = vmatprep.subr.mxu0 %v262
        %390 = vmatpush1.msra.mxu0 %v261
        %391 = vmatprep.subr.mxu0 %v266
        %392 = vmatpush1.msra.mxu0 %v265
        %393 = vmatprep.subr.mxu0 %v270
        %394 = vmatpush1.msra.mxu0 %v269
        %395 = vmatprep.subr.mxu0 %v274
        %396 = vmatpush1.msra.mxu0 %v273
        %397 = vmatprep.subr.mxu0 %v278
        %398 = vmatpush1.msra.mxu0 %v277
        %399 = vmatprep.subr.mxu0 %v282
        %400 = vmatpush1.msra.mxu0 %v281
        %401 = vmatprep.subr.mxu0 0.0
        %402 = vmatpush1.msra.mxu0 0.0
        %403 = vmatprep.subr.mxu0 0.0
        %404 = vmatpush1.msra.mxu0 0.0
        %405 = vmatprep.subr.mxu0 0.0
        %406 = vmatpush1.msra.mxu0 0.0
        %407 = vmatprep.subr.mxu0 0.0
        %408 = vmatpush1.msra.mxu0 0.0
        %409 = vmatprep.subr.mxu0 0.0
        %410 = vmatpush1.msra.mxu0 0.0
        %411 = vmatprep.subr.mxu0 0.0
        %412 = vmatpush1.msra.mxu0 0.0
        %413 = vmatprep.subr.mxu0 0.0
        %414 = vmatpush1.msra.mxu0 0.0
        %415 = vmatprep.subr.mxu0 0.0
        %416 = vmatpush1.msra.mxu0 0.0
        %417 = vmatprep.subr.mxu0 0.0
        %418 = vmatpush1.msra.mxu0 0.0
        %419 = vmatprep.subr.mxu0 0.0
        %420 = vmatpush1.msra.mxu0 0.0
        %421 = vmatprep.subr.mxu0 0.0
        %422 = vmatpush1.msra.mxu0 0.0
        %423 = vmatprep.subr.mxu0 0.0
        %424 = vmatpush1.msra.mxu0 0.0
        %425 = vmatprep.subr.mxu0 0.0
        %426 = vmatpush1.msra.mxu0 0.0
        %427 = vmatprep.subr.mxu0 0.0
        %428 = vmatpush1.msra.mxu0 0.0
        %429 = vmatprep.subr.mxu0 0.0
        %430 = vmatpush1.msra.mxu0 0.0
        %431 = vmatprep.subr.mxu0 0.0
        %432 = vmatpush1.msra.mxu0 0.0
        %433 = vmatprep.subr.mxu0 0.0
        %434 = vmatpush1.msra.mxu0 0.0
        %435 = vmatprep.subr.mxu0 0.0
        %436 = vmatpush1.msra.mxu0 0.0
        %437 = vmatprep.subr.mxu0 0.0
        %438 = vmatpush1.msra.mxu0 0.0
        %439 = vmatprep.subr.mxu0 0.0
        %440 = vmatpush1.msra.mxu0 0.0
        %441 = vmatprep.subr.mxu0 0.0
        %442 = vmatpush1.msra.mxu0 0.0
        %443 = vmatprep.subr.mxu0 0.0
        %444 = vmatpush1.msra.mxu0 0.0
        %445 = vmatprep.subr.mxu0 0.0
        %446 = vmatpush1.msra.mxu0 0.0
        %447 = vmatprep.subr.mxu0 0.0
        %448 = vmatpush1.msra.mxu0 0.0
        %449 = vmatprep.mubr.f32.mxu0 0.0
        %450 = vmatmul.mubr.f32.gmra.mrb[0].mxu0 %v285
        %v451 = vpop.f32.mrb[0].mxu0
        %v452 = vadd.f32 0.0, %v451
        %v453 = vpop.f32.mrb[0].mxu0
        %v454 = vadd.f32 0.0, %v453
        %455 = vmatprep.mubr.f32.mxu0 0.0
        %456 = vmatmul.mubr.f32.gmra.mrb[0].mxu0 %v288
        %v457 = vpop.f32.mrb[0].mxu0
        %v458 = vadd.f32 0.0, %v457
        %v459 = vpop.f32.mrb[0].mxu0
        %v460 = vadd.f32 0.0, %v459
        %461 = vmatprep.mubr.f32.mxu0 0.0
        %462 = vmatmul.mubr.f32.gmra.mrb[0].mxu0 %v291
        %v463 = vpop.f32.mrb[0].mxu0
        %v464 = vadd.f32 0.0, %v463
        %v465 = vpop.f32.mrb[0].mxu0
        %v466 = vadd.f32 0.0, %v465
        %467 = vmatprep.mubr.f32.mxu0 0.0
        %468 = vmatmul.mubr.f32.gmra.mrb[0].mxu0 %v294
        %v469 = vpop.f32.mrb[0].mxu0
        %v470 = vadd.f32 0.0, %v469
        %v471 = vpop.f32.mrb[0].mxu0
        %v472 = vadd.f32 0.0, %v471
        %473 = vdwg.mxu0
        %v474 = vmax.f32 %v363, 0.0
        %v475 = vmax.f32 %v365, 0.0
        %v476 = vmax.f32 %v452, 0.0
        %v477 = vmax.f32 %v454, 0.0
        %v478 = vmax.f32 %v369, 0.0
        %v479 = vmax.f32 %v371, 0.0
        %v480 = vmax.f32 %v458, 0.0
        %v481 = vmax.f32 %v460, 0.0
        %v482 = vmax.f32 %v375, 0.0
        %v483 = vmax.f32 %v377, 0.0
        %v484 = vmax.f32 %v464, 0.0
        %v485 = vmax.f32 %v466, 0.0
        %v486 = vmax.f32 %v381, 0.0
        %v487 = vmax.f32 %v383, 0.0
        %v488 = vmax.f32 %v470, 0.0
        %v489 = vmax.f32 %v472, 0.0
        %v490 = vld [vmem:[#allocation7] sm:$0xff]
        %v491 = vld [vmem:[#allocation7 + $0x8] sm:$0xff]
        %v492 = vld [vmem:[#allocation7 + $0x10] sm:$0xff]
        %v493 = vld [vmem:[#allocation7 + $0x18] sm:$0xff]
        %v494 = vld [vmem:[#allocation7 + $0x20] sm:$0xff]
        %v495 = vld [vmem:[#allocation7 + $0x28] sm:$0xff]
        %v496 = vld [vmem:[#allocation7 + $0x30] sm:$0xff]
        %v497 = vld [vmem:[#allocation7 + $0x38] sm:$0xff]
        %v498 = vld [vmem:[#allocation7 + $0x40] sm:$0xff]
        %v499 = vld [vmem:[#allocation7 + $0x48] sm:$0xff]
        %v500 = vld [vmem:[#allocation7 + $0x50] sm:$0xff]
        %v501 = vld [vmem:[#allocation7 + $0x58] sm:$0xff]
        %v502 = vld [vmem:[#allocation7 + $0x60] sm:$0xff]
        %v503 = vld [vmem:[#allocation7 + $0x68] sm:$0xff]
        %v504 = vld [vmem:[#allocation7 + $0x70] sm:$0xff]
        %v505 = vld [vmem:[#allocation7 + $0x78] sm:$0xff]
        %v506 = vld [vmem:[#allocation7 + $0x80] sm:$0xff]
        %v507 = vld [vmem:[#allocation7 + $0x88] sm:$0xff]
        %v508 = vld [vmem:[#allocation7 + $0x90] sm:$0xff]
        %v509 = vld [vmem:[#allocation7 + $0x98] sm:$0xff]
        %v510 = vld [vmem:[#allocation7 + $0xa0] sm:$0xff]
        %v511 = vld [vmem:[#allocation7 + $0xa8] sm:$0xff]
        %v512 = vld [vmem:[#allocation7 + $0xb0] sm:$0xff]
        %v513 = vld [vmem:[#allocation7 + $0xb8] sm:$0xff]
        %v514 = vld [vmem:[#allocation7 + $0xc0] sm:$0xff]
        %v515 = vld [vmem:[#allocation7 + $0xc8] sm:$0xff]
        %v516 = vld [vmem:[#allocation7 + $0xd0] sm:$0xff]
        %v517 = vld [vmem:[#allocation7 + $0xd8] sm:$0xff]
        %v518 = vld [vmem:[#allocation7 + $0xe0] sm:$0xff]
        %v519 = vld [vmem:[#allocation7 + $0xe8] sm:$0xff]
        %v520 = vld [vmem:[#allocation7 + $0xf0] sm:$0xff]
        %v521 = vld [vmem:[#allocation7 + $0xf8] sm:$0xff]
        %v522 = vld [vmem:[#allocation7 + $0x100] sm:$0xff]
        %v523 = vld [vmem:[#allocation7 + $0x108] sm:$0xff]
        %v524 = vld [vmem:[#allocation7 + $0x110] sm:$0xff]
        %v525 = vld [vmem:[#allocation7 + $0x118] sm:$0xff]
        %v526 = vld [vmem:[#allocation7 + $0x120] sm:$0xff]
        %v527 = vld [vmem:[#allocation7 + $0x128] sm:$0xff]
        %v528 = vld [vmem:[#allocation7 + $0x130] sm:$0xff]
        %v529 = vld [vmem:[#allocation7 + $0x138] sm:$0xff]
        %v530 = vld [vmem:[#allocation7 + $0x140] sm:$0xff]
        %v531 = vld [vmem:[#allocation7 + $0x148] sm:$0xff]
        %v532 = vld [vmem:[#allocation7 + $0x150] sm:$0xff]
        %v533 = vld [vmem:[#allocation7 + $0x158] sm:$0xff]
        %v534 = vld [vmem:[#allocation7 + $0x160] sm:$0xff]
        %v535 = vld [vmem:[#allocation7 + $0x168] sm:$0xff]
        %v536 = vld [vmem:[#allocation7 + $0x170] sm:$0xff]
        %v537 = vld [vmem:[#allocation7 + $0x178] sm:$0xff]
        %v538 = vld [vmem:[#allocation7 + $0x180] sm:$0xff]
        %v539 = vld [vmem:[#allocation7 + $0x188] sm:$0xff]
        %v540 = vld [vmem:[#allocation7 + $0x190] sm:$0xff]
        %v541 = vld [vmem:[#allocation7 + $0x198] sm:$0xff]
        %v542 = vld [vmem:[#allocation7 + $0x1a0] sm:$0xff]
        %v543 = vld [vmem:[#allocation7 + $0x1a8] sm:$0xff]
        %v544 = vld [vmem:[#allocation7 + $0x1b0] sm:$0xff]
        %v545 = vld [vmem:[#allocation7 + $0x1b8] sm:$0xff]
        %v546 = vld [vmem:[#allocation7 + $0x1c0] sm:$0xff]
        %v547 = vld [vmem:[#allocation7 + $0x1c8] sm:$0xff]
        %v548 = vld [vmem:[#allocation7 + $0x1d0] sm:$0xff]
        %v549 = vld [vmem:[#allocation7 + $0x1d8] sm:$0xff]
        %v550 = vld [vmem:[#allocation7 + $0x1e0] sm:$0xff]
        %v551 = vld [vmem:[#allocation7 + $0x1e8] sm:$0xff]
        %v552 = vld [vmem:[#allocation7 + $0x1f0] sm:$0xff]
        %v553 = vld [vmem:[#allocation7 + $0x1f8] sm:$0xff]
        %v554 = vld [vmem:[%s3] sm:$0x1]
        %v556 = vlaneseq
        %v557 = vshrl.u32 %v556, 7
        %v558 = vsub.s32 0, %v557
        %v559 = vrot.slane %v554, %v558
        %561 = vmatprep.subr.mxu0 0.0
        %562 = vmatpush1.msra.mxu0 %v490
        %563 = vmatprep.subr.mxu0 0.0
        %564 = vmatpush1.msra.mxu0 %v491
        %565 = vmatprep.subr.mxu0 0.0
        %566 = vmatpush1.msra.mxu0 %v492
        %567 = vmatprep.subr.mxu0 0.0
        %568 = vmatpush1.msra.mxu0 %v493
        %569 = vmatprep.subr.mxu0 0.0
        %570 = vmatpush1.msra.mxu0 %v494
        %571 = vmatprep.subr.mxu0 0.0
        %572 = vmatpush1.msra.mxu0 %v495
        %573 = vmatprep.subr.mxu0 0.0
        %574 = vmatpush1.msra.mxu0 %v496
        %575 = vmatprep.subr.mxu0 0.0
        %576 = vmatpush1.msra.mxu0 %v497
        %577 = vmatprep.subr.mxu0 0.0
        %578 = vmatpush1.msra.mxu0 %v498
        %579 = vmatprep.subr.mxu0 0.0
        %580 = vmatpush1.msra.mxu0 %v499
        %581 = vmatprep.subr.mxu0 0.0
        %582 = vmatpush1.msra.mxu0 %v500
        %583 = vmatprep.subr.mxu0 0.0
        %584 = vmatpush1.msra.mxu0 %v501
        %585 = vmatprep.subr.mxu0 0.0
        %586 = vmatpush1.msra.mxu0 %v502
        %587 = vmatprep.subr.mxu0 0.0
        %588 = vmatpush1.msra.mxu0 %v503
        %589 = vmatprep.subr.mxu0 0.0
        %590 = vmatpush1.msra.mxu0 %v504
        %591 = vmatprep.subr.mxu0 0.0
        %592 = vmatpush1.msra.mxu0 %v505
        %593 = vmatprep.subr.mxu0 0.0
        %594 = vmatpush1.msra.mxu0 %v506
        %595 = vmatprep.subr.mxu0 0.0
        %596 = vmatpush1.msra.mxu0 %v507
        %597 = vmatprep.subr.mxu0 0.0
        %598 = vmatpush1.msra.mxu0 %v508
        %599 = vmatprep.subr.mxu0 0.0
        %600 = vmatpush1.msra.mxu0 %v509
        %601 = vmatprep.subr.mxu0 0.0
        %602 = vmatpush1.msra.mxu0 %v510
        %603 = vmatprep.subr.mxu0 0.0
        %604 = vmatpush1.msra.mxu0 %v511
        %605 = vmatprep.subr.mxu0 0.0
        %606 = vmatpush1.msra.mxu0 %v512
        %607 = vmatprep.subr.mxu0 0.0
        %608 = vmatpush1.msra.mxu0 %v513
        %609 = vmatprep.subr.mxu0 0.0
        %610 = vmatpush1.msra.mxu0 %v514
        %611 = vmatprep.subr.mxu0 0.0
        %612 = vmatpush1.msra.mxu0 %v515
        %613 = vmatprep.subr.mxu0 0.0
        %614 = vmatpush1.msra.mxu0 %v516
        %615 = vmatprep.subr.mxu0 0.0
        %616 = vmatpush1.msra.mxu0 %v517
        %617 = vmatprep.subr.mxu0 0.0
        %618 = vmatpush1.msra.mxu0 %v518
        %619 = vmatprep.subr.mxu0 0.0
        %620 = vmatpush1.msra.mxu0 %v519
        %621 = vmatprep.subr.mxu0 0.0
        %622 = vmatpush1.msra.mxu0 %v520
        %623 = vmatprep.subr.mxu0 0.0
        %624 = vmatpush1.msra.mxu0 %v521
        %625 = vmatprep.mubr.f32.mxu0 %v475
        %626 = vmatmul.mubr.f32.gmra.mrb[0].mxu0 %v474
        %v627 = vpop.f32.mrb[0].mxu0
        %v628 = vadd.f32 %v559, %v627
        %v629 = vpop.f32.mrb[0].mxu0
        %630 = vmatprep.mubr.f32.mxu0 %v479
        %631 = vmatmul.mubr.f32.gmra.mrb[0].mxu0 %v478
        %v632 = vpop.f32.mrb[0].mxu0
        %v633 = vadd.f32 %v559, %v632
        %v634 = vpop.f32.mrb[0].mxu0
        %635 = vmatprep.mubr.f32.mxu0 %v483
        %636 = vmatmul.mubr.f32.gmra.mrb[0].mxu0 %v482
        %v637 = vpop.f32.mrb[0].mxu0
        %v638 = vadd.f32 %v559, %v637
        %v639 = vpop.f32.mrb[0].mxu0
        %640 = vmatprep.mubr.f32.mxu0 %v487
        %641 = vmatmul.mubr.f32.gmra.mrb[0].mxu0 %v486
        %v642 = vpop.f32.mrb[0].mxu0
        %v643 = vadd.f32 %v559, %v642
        %v644 = vpop.f32.mrb[0].mxu0
        %645 = vdwg.mxu0
        %646 = vmatprep.subr.mxu0 0.0
        %647 = vmatpush1.msra.mxu0 %v522
        %648 = vmatprep.subr.mxu0 0.0
        %649 = vmatpush1.msra.mxu0 %v523
        %650 = vmatprep.subr.mxu0 0.0
        %651 = vmatpush1.msra.mxu0 %v524
        %652 = vmatprep.subr.mxu0 0.0
        %653 = vmatpush1.msra.mxu0 %v525
        %654 = vmatprep.subr.mxu0 0.0
        %655 = vmatpush1.msra.mxu0 %v526
        %656 = vmatprep.subr.mxu0 0.0
        %657 = vmatpush1.msra.mxu0 %v527
        %658 = vmatprep.subr.mxu0 0.0
        %659 = vmatpush1.msra.mxu0 %v528
        %660 = vmatprep.subr.mxu0 0.0
        %661 = vmatpush1.msra.mxu0 %v529
        %662 = vmatprep.subr.mxu0 0.0
        %663 = vmatpush1.msra.mxu0 %v530
        %664 = vmatprep.subr.mxu0 0.0
        %665 = vmatpush1.msra.mxu0 %v531
        %666 = vmatprep.subr.mxu0 0.0
        %667 = vmatpush1.msra.mxu0 %v532
        %668 = vmatprep.subr.mxu0 0.0
        %669 = vmatpush1.msra.mxu0 %v533
        %670 = vmatprep.subr.mxu0 0.0
        %671 = vmatpush1.msra.mxu0 %v534
        %672 = vmatprep.subr.mxu0 0.0
        %673 = vmatpush1.msra.mxu0 %v535
        %674 = vmatprep.subr.mxu0 0.0
        %675 = vmatpush1.msra.mxu0 %v536
        %676 = vmatprep.subr.mxu0 0.0
        %677 = vmatpush1.msra.mxu0 %v537
        %678 = vmatprep.subr.mxu0 0.0
        %679 = vmatpush1.msra.mxu0 %v538
        %680 = vmatprep.subr.mxu0 0.0
        %681 = vmatpush1.msra.mxu0 %v539
        %682 = vmatprep.subr.mxu0 0.0
        %683 = vmatpush1.msra.mxu0 %v540
        %684 = vmatprep.subr.mxu0 0.0
        %685 = vmatpush1.msra.mxu0 %v541
        %686 = vmatprep.subr.mxu0 0.0
        %687 = vmatpush1.msra.mxu0 %v542
        %688 = vmatprep.subr.mxu0 0.0
        %689 = vmatpush1.msra.mxu0 %v543
        %690 = vmatprep.subr.mxu0 0.0
        %691 = vmatpush1.msra.mxu0 %v544
        %692 = vmatprep.subr.mxu0 0.0
        %693 = vmatpush1.msra.mxu0 %v545
        %694 = vmatprep.subr.mxu0 0.0
        %695 = vmatpush1.msra.mxu0 %v546
        %696 = vmatprep.subr.mxu0 0.0
        %697 = vmatpush1.msra.mxu0 %v547
        %698 = vmatprep.subr.mxu0 0.0
        %699 = vmatpush1.msra.mxu0 %v548
        %700 = vmatprep.subr.mxu0 0.0
        %701 = vmatpush1.msra.mxu0 %v549
        %702 = vmatprep.subr.mxu0 0.0
        %703 = vmatpush1.msra.mxu0 %v550
        %704 = vmatprep.subr.mxu0 0.0
        %705 = vmatpush1.msra.mxu0 %v551
        %706 = vmatprep.subr.mxu0 0.0
        %707 = vmatpush1.msra.mxu0 %v552
        %708 = vmatprep.subr.mxu0 0.0
        %709 = vmatpush1.msra.mxu0 %v553
        %710 = vmatprep.mubr.f32.mxu0 %v477
        %711 = vmatmul.mubr.f32.gmra.mrb[0].mxu0 %v476
        %v712 = vpop.f32.mrb[0].mxu0
        %v713 = vadd.f32 %v628, %v712
        %v714 = vpop.f32.mrb[0].mxu0
        %715 = vmatprep.mubr.f32.mxu0 %v481
        %716 = vmatmul.mubr.f32.gmra.mrb[0].mxu0 %v480
        %v717 = vpop.f32.mrb[0].mxu0
        %v718 = vadd.f32 %v633, %v717
        %v719 = vpop.f32.mrb[0].mxu0
        %720 = vmatprep.mubr.f32.mxu0 %v485
        %721 = vmatmul.mubr.f32.gmra.mrb[0].mxu0 %v484
        %v722 = vpop.f32.mrb[0].mxu0
        %v723 = vadd.f32 %v638, %v722
        %v724 = vpop.f32.mrb[0].mxu0
        %725 = vmatprep.mubr.f32.mxu0 %v489
        %726 = vmatmul.mubr.f32.gmra.mrb[0].mxu0 %v488
        %v727 = vpop.f32.mrb[0].mxu0
        %v728 = vadd.f32 %v643, %v727
        %v729 = vpop.f32.mrb[0].mxu0
        %730 = vdwg.mxu0
        %v731 = vmax.f32 %v713, 0.0
        %v732 = vmax.f32 %v718, 0.0
        %v733 = vmax.f32 %v723, 0.0
        %v734 = vmax.f32 %v728, 0.0
        %735 = vst [vmem:[%s244] sm:$0xff] %v731
        %736 = vst [vmem:[%s244 + $0x8] sm:$0xff] %v732
        %737 = vst [vmem:[%s244 + $0x10] sm:$0xff] %v733
        %738 = vst [vmem:[%s244 + $0x18] sm:$0xff] %v734
        %s739 = sand.u32 %s119, 1
        %s740 = scalar_lea.sflag [#allocation4], %s739
        %s741 = sand.u32 %s119, 1
        %s742 = smul.addr %s741, 32
        %s743 = scalar_lea.vmem [#allocation8], %s742
        // Predicated region
        $region49: #{tpu_custom_call.1} parent=35 // pred_check
          %p744 = pneg %p129
        $region50: #{tpu_custom_call.1} parent=35 // pred_check_branch
          %746 = sbr.rel (%p744) target = $region52
        $region51: #{tpu_custom_call.1} parent=35 // pred_region
          %s747 = smul.u32 4, %s22
          %s749 = ssub.s32 512, 512
          %750 = vsyncadd %s740, %s749
          %s751 = smul.addr %s747, 128
          %s752 = scalar_lea.hbm %s4, %s751
          %s753 = sshll.u32 %s743, 4
          %s754 = int_to_ptr.vmem [resolvable:$true] %s753
          %759 = dma.vmem_to_hbm [thread:$0]  %s754, 512, %s752, %s740, 128, 128, 8
        $region52: #{tpu_custom_call.1} parent=35 // pred_fallthru
          _
      $region36: #{tpu_custom_call.1} parent=5 // pred_fallthru
        _
      %p760 = scmp.le.s32.totalorder 2, %s17
      // Predicated region
      $region53: #{tpu_custom_call.1} parent=5 // pred_check
        %p761 = pneg %p760
      $region54: #{tpu_custom_call.1} parent=5 // pred_check_branch
        %763 = sbr.rel (%p761) target = $region56
      $region55: #{tpu_custom_call.1} parent=5 // pred_region
        %s764 = ssub.s32 %s17, 2
        // Predicated region
        $region57: #{tpu_custom_call.1} parent=55 // pred_check
          %p765 = pneg %p135
        $region58: #{tpu_custom_call.1} parent=55 // pred_check_branch
          %767 = sbr.rel (%p765) target = $region60
        $region59: #{tpu_custom_call.1} parent=55 // pred_region
          %s768 = sand.u32 %s120, 1
          %s769 = scalar_lea.sflag [#allocation4], %s768
          %s770 = sand.u32 %s120, 1
          %s771 = smul.addr %s770, 32
          %s772 = scalar_lea.vmem [#allocation8], %s771
          %773 = dma.done %s769, 512
        $region60: #{tpu_custom_call.1} parent=55 // pred_fallthru
          _
      $region56: #{tpu_custom_call.1} parent=5 // pred_fallthru
        _
    $region6: #{tpu_custom_call.1} parent=1 // loop_footer
      %s21 = sadd.s32 1, %s17
    $region7: #{tpu_custom_call.1} parent=1 // loop_footer_branch
      %16 = sbr.rel target = $region3
    $region8: #{tpu_custom_call.1} parent=1 // loop_exit
      _
    %774 = vsyncpa [#allocation3], 1
    %s775 = scalar_lea.sflag [#allocation3], 1
    %776 = vsyncpa %s775, 1
    %777 = vsyncpa [#allocation6], 1
    %778 = vsyncpa [#allocation4], 1
    %s779 = scalar_lea.sflag [#allocation4], 1
    %780 = vsyncpa %s779, 1

</llo_original>
